<compile_context>
chip_gen: v7x
topology: tpu7x:2x2x1
jax: 0.10.0
libtpu: 0.0.40
codegen_flags: <defaults>
</compile_context>

<pallas_src>
import functools

import jax
import jax.numpy as jnp
from jax.experimental import pallas as pl
from jax.experimental.pallas import tpu as pltpu

_COVR_len = 5
_TARG_len = 5
IN_DIM = 10 * _COVR_len      # 50
HID = 80                     # SizeParam
OUT_DIM = 10 * _TARG_len     # 50
NEG_SLOPE = 0.01             # F.leaky_relu default


def _leaky_relu(h):
    return jnp.where(h > 0, h, NEG_SLOPE * h)


def _cdiv(a, b):
    return -(-a // b)


def _round_up(n, m):
    return _cdiv(n, m) * m


def regress_kernel(x_ref,
                   w1_ref, b1_ref,
                   wh_ref, bh_ref,      # stacked fc11 / fc12 / fc14
                   w2_ref, b2_ref,
                   x1_ref, y_ref):
    # Whole hot path (5 matmuls + bias + leaky_relu) on one (tb, *) tile.
    h = jnp.dot(x_ref[...], w1_ref[...], preferred_element_type=jnp.float32)
    h = _leaky_relu(h + b1_ref[...])

    for k in range(3):  # static unroll: fc11, fc12, fc14 (all (80,80))
        h = jnp.dot(h, wh_ref[k], preferred_element_type=jnp.float32)
        h = _leaky_relu(h + bh_ref[k])

    y = jnp.dot(h, w2_ref[...], preferred_element_type=jnp.float32) + b2_ref[...]

    x1_ref[...] = h.astype(x1_ref.dtype)
    y_ref[...] = y.astype(y_ref.dtype)


@functools.partial(jax.jit, static_argnames=("tb",))
def regress_forward(x, packed, tb=512):
    """x: (B, 50) float32. packed: output of pack_params (weights as (in,out))."""
    B = x.shape[0]

    # --- tiling ---------------------------------------------------------
    n_steps = _cdiv(B, tb)
    if B >= 64:
        # Keep >= 2 grid steps so both v7x TensorCores get work.
        n_steps = max(n_steps, 2)
    tb_eff = _round_up(_cdiv(B, n_steps), 8)   # sublane-aligned tile
    B_pad = n_steps * tb_eff
    if B_pad != B:
        x = jnp.pad(x, ((0, B_pad - B), (0, 0)))

    # Constant index maps => weights/biases stay VMEM-resident (no re-DMA).
    def const2(shape):
        return pl.BlockSpec(shape, lambda i: (0, 0))

    def const3(shape):
        return pl.BlockSpec(shape, lambda i: (0, 0, 0))

    grid_spec = pltpu.PrefetchScalarGridSpec(
        num_scalar_prefetch=0,
        grid=(n_steps,),
        in_specs=[
            pl.BlockSpec((tb_eff, IN_DIM), lambda i: (i, 0)),     # x
            const2((IN_DIM, HID)), const2((1, HID)),              # fc1
            const3((3, HID, HID)), const3((3, 1, HID)),           # fc11/12/14
            const2((HID, OUT_DIM)), const2((1, OUT_DIM)),         # fc2
        ],
        out_specs=[
            pl.BlockSpec((tb_eff, HID), lambda i: (i, 0)),        # x1 (B,80)
            pl.BlockSpec((tb_eff, OUT_DIM), lambda i: (i, 0)),    # output (B,50)
        ],
    )

    x1_p, y_p = pl.pallas_call(
        regress_kernel,
        out_shape=(
            jax.ShapeDtypeStruct((B_pad, HID), jnp.float32),
            jax.ShapeDtypeStruct((B_pad, OUT_DIM), jnp.float32),
        ),
        grid_spec=grid_spec,
        compiler_params=pltpu.CompilerParams(
            dimension_semantics=("parallel",)),
    )(
        x,
        packed["w1"], packed["b1"],
        packed["wh"], packed["bh"],
        packed["w2"], packed["b2"],
    )

    if B_pad != B:  # only when the batch itself was padded
        x1_p = x1_p[:B]
        y_p = y_p[:B]
    return x1_p, y_p


def init_params(key):
    """nn.Linear-style init: U(-1/sqrt(fan_in), +). Weights stored (in, out)."""
    def linear(key, fan_in, fan_out):
        kw, kb = jax.random.split(key)
        bound = 1.0 / jnp.sqrt(fan_in)
        w = jax.random.uniform(kw, (fan_in, fan_out), jnp.float32, -bound, bound)
        b = jax.random.uniform(kb, (1, fan_out), jnp.float32, -bound, bound)
        return w, b

    k1, k11, k12, k14, k2 = jax.random.split(key, 5)
    p = {}
    p["w1"], p["b1"] = linear(k1, IN_DIM, HID)
    p["w11"], p["b11"] = linear(k11, HID, HID)
    p["w12"], p["b12"] = linear(k12, HID, HID)
    p["w14"], p["b14"] = linear(k14, HID, HID)
    p["w2"], p["b2"] = linear(k2, HID, OUT_DIM)
    return p


def pack_params(p):
    """One-time packing (hoisted out of the per-call jitted forward)."""
    return {
        "w1": p["w1"], "b1": p["b1"],
        "wh": jnp.stack([p["w11"], p["w12"], p["w14"]]),   # (3, 80, 80)
        "bh": jnp.stack([p["b11"], p["b12"], p["b14"]]),   # (3, 1, 80)
        "w2": p["w2"], "b2": p["b2"],
    }


def regress_reference(x, p):
    """Pure-JAX reference for correctness check."""
    h = _leaky_relu(x @ p["w1"] + p["b1"])
    h = _leaky_relu(h @ p["w11"] + p["b11"])
    h = _leaky_relu(h @ p["w12"] + p["b12"])
    h = _leaky_relu(h @ p["w14"] + p["b14"])
    y = h @ p["w2"] + p["b2"]
    return h, y


if __name__ == "__main__":
    key = jax.random.PRNGKey(0)
    kx, kp = jax.random.split(key)
    raw = init_params(kp)
    packed = pack_params(raw)

    # Small even batch: single grid step.
    B = 16
    x = jax.random.normal(kx, (B, IN_DIM), jnp.float32)
    x1, y = regress_forward(x, packed)
    jax.block_until_ready((x1, y))
    x1_r, y_r = regress_reference(x, raw)
    assert x1.shape == (B, HID) and y.shape == (B, OUT_DIM)
    assert jnp.allclose(x1, x1_r, atol=1e-4, rtol=1e-4)
    assert jnp.allclose(y, y_r, atol=1e-4, rtol=1e-4)

    # Ragged batch: exercises the 2-step grid + pad-and-slice path
    # (B=100 -> 2 steps of 56 rows, B_pad=112).
    B2 = 100
    x2 = jax.random.normal(kx, (B2, IN_DIM), jnp.float32)
    x1_2, y_2 = regress_forward(x2, packed)
    jax.block_until_ready((x1_2, y_2))
    x1_2r, y_2r = regress_reference(x2, raw)
    assert x1_2.shape == (B2, HID) and y_2.shape == (B2, OUT_DIM)
    assert jnp.allclose(x1_2, x1_2r, atol=1e-4, rtol=1e-4)
    assert jnp.allclose(y_2, y_2r, atol=1e-4, rtol=1e-4)

    print("KERNEL_OK")
</pallas_src>

<mosaic_0001>
module attributes {stable_mosaic.version = 11 : i64} {
  func.func @regress_kernel(%arg0: i32, %arg1: memref<16x50xf32, #tpu.memory_space<vmem>>, %arg2: memref<50x80xf32, #tpu.memory_space<vmem>>, %arg3: memref<1x80xf32, #tpu.memory_space<vmem>>, %arg4: memref<3x80x80xf32, #tpu.memory_space<vmem>>, %arg5: memref<3x1x80xf32, #tpu.memory_space<vmem>>, %arg6: memref<80x50xf32, #tpu.memory_space<vmem>>, %arg7: memref<1x50xf32, #tpu.memory_space<vmem>>, %arg8: memref<16x80xf32, #tpu.memory_space<vmem>>, %arg9: memref<16x50xf32, #tpu.memory_space<vmem>>) attributes {dimension_semantics = [#tpu.dimension_semantics<parallel>], iteration_bounds = array<i64: 1>, scalar_prefetch = 0 : i64, scratch_operands = 0 : i64, tpu.core_type = #tpu.core_type<tc>, window_params = [{transform_indices = @transform_0, window_bounds = array<i64: 16, 50>}, {pipeline_mode = #tpu.pipeline_mode<synchronous>, transform_indices = @transform_1, window_bounds = array<i64: 50, 80>}, {pipeline_mode = #tpu.pipeline_mode<synchronous>, transform_indices = @transform_2, window_bounds = array<i64: 1, 80>}, {pipeline_mode = #tpu.pipeline_mode<synchronous>, transform_indices = @transform_3, window_bounds = array<i64: 3, 80, 80>}, {pipeline_mode = #tpu.pipeline_mode<synchronous>, transform_indices = @transform_4, window_bounds = array<i64: 3, 1, 80>}, {pipeline_mode = #tpu.pipeline_mode<synchronous>, transform_indices = @transform_5, window_bounds = array<i64: 80, 50>}, {pipeline_mode = #tpu.pipeline_mode<synchronous>, transform_indices = @transform_6, window_bounds = array<i64: 1, 50>}, {transform_indices = @transform_7, window_bounds = array<i64: 16, 80>}, {transform_indices = @transform_8, window_bounds = array<i64: 16, 50>}]} {
    %c0 = arith.constant 0 : index
    %c0_0 = arith.constant 0 : index
    %0 = vector.load %arg1[%c0, %c0_0] : memref<16x50xf32, #tpu.memory_space<vmem>>, vector<16x50xf32>
    %c0_1 = arith.constant 0 : index
    %c0_2 = arith.constant 0 : index
    %1 = vector.load %arg2[%c0_1, %c0_2] : memref<50x80xf32, #tpu.memory_space<vmem>>, vector<50x80xf32>
    %cst = arith.constant dense<0.000000e+00> : vector<16x80xf32>
    %2 = tpu.matmul %0, %1, %cst {dimension_numbers = #tpu.dot_dimension_numbers<[1], [0], [0], [1], [0, 0, 1, 1], [], []>} : vector<16x50xf32>, vector<50x80xf32>, vector<16x80xf32> -> vector<16x80xf32>
    %c0_3 = arith.constant 0 : index
    %c0_4 = arith.constant 0 : index
    %3 = vector.load %arg3[%c0_3, %c0_4] : memref<1x80xf32, #tpu.memory_space<vmem>>, vector<1x80xf32>
    %4 = vector.broadcast %3 : vector<1x80xf32> to vector<16x80xf32>
    %5 = arith.addf %2, %4 : vector<16x80xf32>
    %cst_5 = arith.constant 0.000000e+00 : f32
    %6 = vector.broadcast %cst_5 : f32 to vector<16x80xf32>
    %7 = arith.cmpf ogt, %5, %6 : vector<16x80xf32>
    %cst_6 = arith.constant 0.00999999977 : f32
    %8 = vector.broadcast %cst_6 : f32 to vector<16x80xf32>
    %9 = arith.mulf %8, %5 : vector<16x80xf32>
    %10 = arith.select %7, %5, %9 : vector<16x80xi1>, vector<16x80xf32>
    %c0_7 = arith.constant 0 : index
    %c0_8 = arith.constant 0 : index
    %c0_9 = arith.constant 0 : index
    %11 = vector.load %arg4[%c0_7, %c0_8, %c0_9] : memref<3x80x80xf32, #tpu.memory_space<vmem>>, vector<1x80x80xf32>
    %12 = vector.shape_cast %11 : vector<1x80x80xf32> to vector<80x80xf32>
    %cst_10 = arith.constant dense<0.000000e+00> : vector<16x80xf32>
    %13 = tpu.matmul %10, %12, %cst_10 {dimension_numbers = #tpu.dot_dimension_numbers<[1], [0], [0], [1], [0, 0, 1, 1], [], []>} : vector<16x80xf32>, vector<80x80xf32>, vector<16x80xf32> -> vector<16x80xf32>
    %c0_11 = arith.constant 0 : index
    %c0_12 = arith.constant 0 : index
    %c0_13 = arith.constant 0 : index
    %14 = vector.load %arg5[%c0_11, %c0_12, %c0_13] : memref<3x1x80xf32, #tpu.memory_space<vmem>>, vector<1x1x80xf32>
    %15 = vector.shape_cast %14 : vector<1x1x80xf32> to vector<1x80xf32>
    %16 = vector.broadcast %15 : vector<1x80xf32> to vector<16x80xf32>
    %17 = arith.addf %13, %16 : vector<16x80xf32>
    %cst_14 = arith.constant 0.000000e+00 : f32
    %18 = vector.broadcast %cst_14 : f32 to vector<16x80xf32>
    %19 = arith.cmpf ogt, %17, %18 : vector<16x80xf32>
    %cst_15 = arith.constant 0.00999999977 : f32
    %20 = vector.broadcast %cst_15 : f32 to vector<16x80xf32>
    %21 = arith.mulf %20, %17 : vector<16x80xf32>
    %22 = arith.select %19, %17, %21 : vector<16x80xi1>, vector<16x80xf32>
    %c1 = arith.constant 1 : index
    %c0_16 = arith.constant 0 : index
    %c0_17 = arith.constant 0 : index
    %23 = vector.load %arg4[%c1, %c0_16, %c0_17] : memref<3x80x80xf32, #tpu.memory_space<vmem>>, vector<1x80x80xf32>
    %24 = vector.shape_cast %23 : vector<1x80x80xf32> to vector<80x80xf32>
    %cst_18 = arith.constant dense<0.000000e+00> : vector<16x80xf32>
    %25 = tpu.matmul %22, %24, %cst_18 {dimension_numbers = #tpu.dot_dimension_numbers<[1], [0], [0], [1], [0, 0, 1, 1], [], []>} : vector<16x80xf32>, vector<80x80xf32>, vector<16x80xf32> -> vector<16x80xf32>
    %c1_19 = arith.constant 1 : index
    %c0_20 = arith.constant 0 : index
    %c0_21 = arith.constant 0 : index
    %26 = vector.load %arg5[%c1_19, %c0_20, %c0_21] : memref<3x1x80xf32, #tpu.memory_space<vmem>>, vector<1x1x80xf32>
    %27 = vector.shape_cast %26 : vector<1x1x80xf32> to vector<1x80xf32>
    %28 = vector.broadcast %27 : vector<1x80xf32> to vector<16x80xf32>
    %29 = arith.addf %25, %28 : vector<16x80xf32>
    %cst_22 = arith.constant 0.000000e+00 : f32
    %30 = vector.broadcast %cst_22 : f32 to vector<16x80xf32>
    %31 = arith.cmpf ogt, %29, %30 : vector<16x80xf32>
    %cst_23 = arith.constant 0.00999999977 : f32
    %32 = vector.broadcast %cst_23 : f32 to vector<16x80xf32>
    %33 = arith.mulf %32, %29 : vector<16x80xf32>
    %34 = arith.select %31, %29, %33 : vector<16x80xi1>, vector<16x80xf32>
    %c2 = arith.constant 2 : index
    %c0_24 = arith.constant 0 : index
    %c0_25 = arith.constant 0 : index
    %35 = vector.load %arg4[%c2, %c0_24, %c0_25] : memref<3x80x80xf32, #tpu.memory_space<vmem>>, vector<1x80x80xf32>
    %36 = vector.shape_cast %35 : vector<1x80x80xf32> to vector<80x80xf32>
    %cst_26 = arith.constant dense<0.000000e+00> : vector<16x80xf32>
    %37 = tpu.matmul %34, %36, %cst_26 {dimension_numbers = #tpu.dot_dimension_numbers<[1], [0], [0], [1], [0, 0, 1, 1], [], []>} : vector<16x80xf32>, vector<80x80xf32>, vector<16x80xf32> -> vector<16x80xf32>
    %c2_27 = arith.constant 2 : index
    %c0_28 = arith.constant 0 : index
    %c0_29 = arith.constant 0 : index
    %38 = vector.load %arg5[%c2_27, %c0_28, %c0_29] : memref<3x1x80xf32, #tpu.memory_space<vmem>>, vector<1x1x80xf32>
    %39 = vector.shape_cast %38 : vector<1x1x80xf32> to vector<1x80xf32>
    %40 = vector.broadcast %39 : vector<1x80xf32> to vector<16x80xf32>
    %41 = arith.addf %37, %40 : vector<16x80xf32>
    %cst_30 = arith.constant 0.000000e+00 : f32
    %42 = vector.broadcast %cst_30 : f32 to vector<16x80xf32>
    %43 = arith.cmpf ogt, %41, %42 : vector<16x80xf32>
    %cst_31 = arith.constant 0.00999999977 : f32
    %44 = vector.broadcast %cst_31 : f32 to vector<16x80xf32>
    %45 = arith.mulf %44, %41 : vector<16x80xf32>
    %46 = arith.select %43, %41, %45 : vector<16x80xi1>, vector<16x80xf32>
    %c0_32 = arith.constant 0 : index
    %c0_33 = arith.constant 0 : index
    %47 = vector.load %arg6[%c0_32, %c0_33] : memref<80x50xf32, #tpu.memory_space<vmem>>, vector<80x50xf32>
    %cst_34 = arith.constant dense<0.000000e+00> : vector<16x50xf32>
    %48 = tpu.matmul %46, %47, %cst_34 {dimension_numbers = #tpu.dot_dimension_numbers<[1], [0], [0], [1], [0, 0, 1, 1], [], []>} : vector<16x80xf32>, vector<80x50xf32>, vector<16x50xf32> -> vector<16x50xf32>
    %c0_35 = arith.constant 0 : index
    %c0_36 = arith.constant 0 : index
    %49 = vector.load %arg7[%c0_35, %c0_36] : memref<1x50xf32, #tpu.memory_space<vmem>>, vector<1x50xf32>
    %50 = vector.broadcast %49 : vector<1x50xf32> to vector<16x50xf32>
    %51 = arith.addf %48, %50 : vector<16x50xf32>
    %c0_37 = arith.constant 0 : index
    %c0_38 = arith.constant 0 : index
    %52 = vector.load %arg8[%c0_37, %c0_38] : memref<16x80xf32, #tpu.memory_space<vmem>>, vector<16x80xf32>
    tpu.vector_store %arg8[%c0_37, %c0_38], %46 {strides = array<i32>} : memref<16x80xf32, #tpu.memory_space<vmem>>, vector<16x80xf32>,
    %c0_39 = arith.constant 0 : index
    %c0_40 = arith.constant 0 : index
    %53 = vector.load %arg9[%c0_39, %c0_40] : memref<16x50xf32, #tpu.memory_space<vmem>>, vector<16x50xf32>
    tpu.vector_store %arg9[%c0_39, %c0_40], %51 {strides = array<i32>} : memref<16x50xf32, #tpu.memory_space<vmem>>, vector<16x50xf32>,
    return
  }
  func.func @transform_0(%arg0: i32) -> (i32, i32) {
    %c0_i32 = arith.constant 0 : i32
    %c0_i32_0 = arith.constant 0 : i32
    return %arg0, %c0_i32 : i32, i32
  }
  func.func @transform_1(%arg0: i32) -> (i32, i32) {
    %c0_i32 = arith.constant 0 : i32
    %c0_i32_0 = arith.constant 0 : i32
    %c0_i32_1 = arith.constant 0 : i32
    return %c0_i32, %c0_i32_0 : i32, i32
  }
  func.func @transform_2(%arg0: i32) -> (i32, i32) {
    %c0_i32 = arith.constant 0 : i32
    %c0_i32_0 = arith.constant 0 : i32
    %c0_i32_1 = arith.constant 0 : i32
    return %c0_i32, %c0_i32_0 : i32, i32
  }
  func.func @transform_3(%arg0: i32) -> (i32, i32, i32) {
    %c0_i32 = arith.constant 0 : i32
    %c0_i32_0 = arith.constant 0 : i32
    %c0_i32_1 = arith.constant 0 : i32
    %c0_i32_2 = arith.constant 0 : i32
    return %c0_i32, %c0_i32_0, %c0_i32_1 : i32, i32, i32
  }
  func.func @transform_4(%arg0: i32) -> (i32, i32, i32) {
    %c0_i32 = arith.constant 0 : i32
    %c0_i32_0 = arith.constant 0 : i32
    %c0_i32_1 = arith.constant 0 : i32
    %c0_i32_2 = arith.constant 0 : i32
    return %c0_i32, %c0_i32_0, %c0_i32_1 : i32, i32, i32
  }
  func.func @transform_5(%arg0: i32) -> (i32, i32) {
    %c0_i32 = arith.constant 0 : i32
    %c0_i32_0 = arith.constant 0 : i32
    %c0_i32_1 = arith.constant 0 : i32
    return %c0_i32, %c0_i32_0 : i32, i32
  }
  func.func @transform_6(%arg0: i32) -> (i32, i32) {
    %c0_i32 = arith.constant 0 : i32
    %c0_i32_0 = arith.constant 0 : i32
    %c0_i32_1 = arith.constant 0 : i32
    return %c0_i32, %c0_i32_0 : i32, i32
  }
  func.func @transform_7(%arg0: i32) -> (i32, i32) {
    %c0_i32 = arith.constant 0 : i32
    %c0_i32_0 = arith.constant 0 : i32
    return %arg0, %c0_i32 : i32, i32
  }
  func.func @transform_8(%arg0: i32) -> (i32, i32) {
    %c0_i32 = arith.constant 0 : i32
    %c0_i32_0 = arith.constant 0 : i32
    return %arg0, %c0_i32 : i32, i32
  }
}

</mosaic_0001>

<llo_original>
// kernel: regress_forward.1
$region0: #{regress_forward.1}
  #allocation0 [shape = 'u32[]', space=smem, size = 0x4, offset = 0x4, fixed_abs, tag = 'smem constant byte address 0x4 - core index']
  #allocation1 [shape = 'u32[144,128]{1,0:T(1,128)}', space=vmem, size = 0x12000, scoped, tag = 'internal scratch']
  %s0 = inlined_call_operand.vmem [shape: f32[16,50], index: 0, kind: input, shape index: {}]
  %s1 = inlined_call_operand.vmem [shape: f32[50,80], index: 1, kind: input, shape index: {}]
  %s2 = inlined_call_operand.vmem [shape: f32[1,80], index: 2, kind: input, shape index: {}]
  %s3 = inlined_call_operand.hbm [shape: f32[3,80,80], index: 3, kind: input, shape index: {}]
  %s4 = inlined_call_operand.vmem [shape: f32[3,1,80], index: 4, kind: input, shape index: {}]
  %s5 = inlined_call_operand.vmem [shape: f32[80,50], index: 5, kind: input, shape index: {}]
  %s6 = inlined_call_operand.vmem [shape: f32[1,50], index: 6, kind: input, shape index: {}]
  %s7 = inlined_call_operand.hbm [shape: f32[16,80], index: 7, kind: output, shape index: {0}]
  %s8 = inlined_call_operand.hbm [shape: f32[16,50], index: 8, kind: output, shape index: {1}]
  %9 = xla_tuple %s7, %s8
  %s10 = sld [smem:[#allocation0]]
  $region50: #{regress_forward.1} parent=0
    _
  %s12 = ssub.s32 1, %s10
  %s13 = scalar_select 0, %s12, %s10
  $region1: #{regress_forward.1} parent=0
    #allocation2 [shape = 'u8[122880]{0}', space=vmem, size = 0x1e000, scoped, tag = 'input window, operand 3, single buffered']
    #allocation3 [shape = 's32[1]{0}', space=sflag, size = 0x4, scoped, tag = 'scoped memory for regress_forward.1']
    #allocation4 [shape = 's32[1]{0}', space=sflag, size = 0x4, scoped, tag = 'scoped memory for regress_forward.1']
    #allocation5 [shape = 'u8[8192]{0}', space=vmem, size = 0x2000, scoped, tag = 'output window, operand 0, single buffered']
    #allocation6 [shape = 'u8[8192]{0}', space=vmem, size = 0x2000, scoped, tag = 'output window, operand 1, single buffered']
    #allocation7 [shape = 's32[1]{0}', space=sflag, size = 0x4, scoped, tag = 'scoped memory for regress_forward.1']
    %14 = vsyncpa [#allocation3], 0
    %15 = vsyncpa [#allocation4], 0
    %16 = vsyncpa [#allocation7], 0
    // Predicated region
    $region2: #{regress_forward.1} parent=1 // pred_check
      _
    $region3: #{regress_forward.1} parent=1 // pred_check_branch
      %18 = sbr.rel (0) target = $region5
    $region4: #{regress_forward.1} parent=1 // pred_region
      _
    $region5: #{regress_forward.1} parent=1 // pred_fallthru
      _
    // Predicated region
    $region6: #{regress_forward.1} parent=1 // pred_check
      _
    $region7: #{regress_forward.1} parent=1 // pred_check_branch
      %20 = sbr.rel (0) target = $region9
    $region8: #{regress_forward.1} parent=1 // pred_region
      _
    $region9: #{regress_forward.1} parent=1 // pred_fallthru
      _
    // Predicated region
    $region10: #{regress_forward.1} parent=1 // pred_check
      _
    $region11: #{regress_forward.1} parent=1 // pred_check_branch
      %22 = sbr.rel (0) target = $region13
    $region12: #{regress_forward.1} parent=1 // pred_region
      _
    $region13: #{regress_forward.1} parent=1 // pred_fallthru
      _
    // Predicated region
    $region14: #{regress_forward.1} parent=1 // pred_check
      _
    $region15: #{regress_forward.1} parent=1 // pred_check_branch
      %24 = sbr.rel (0) target = $region17
    $region16: #{regress_forward.1} parent=1 // pred_region
      %s26 = ssub.s32 3840, 3840
      %27 = vsyncadd [#allocation3], %s26
      %s28 = sshll.u32 [#allocation2], 4
      %s29 = int_to_ptr.vmem [resolvable:$true] %s28
      %34 = dma.hbm_to_vmem [thread:$0]  %s3, 3840, %s29, [#allocation3], 128, 128, 8
    $region17: #{regress_forward.1} parent=1 // pred_fallthru
      _
    // Predicated region
    $region18: #{regress_forward.1} parent=1 // pred_check
      _
    $region19: #{regress_forward.1} parent=1 // pred_check_branch
      %36 = sbr.rel (0) target = $region21
    $region20: #{regress_forward.1} parent=1 // pred_region
      _
    $region21: #{regress_forward.1} parent=1 // pred_fallthru
      _
    // Predicated region
    $region22: #{regress_forward.1} parent=1 // pred_check
      _
    $region23: #{regress_forward.1} parent=1 // pred_check_branch
      %38 = sbr.rel (0) target = $region25
    $region24: #{regress_forward.1} parent=1 // pred_region
      _
    $region25: #{regress_forward.1} parent=1 // pred_fallthru
      _
    // Predicated region
    $region26: #{regress_forward.1} parent=1 // pred_check
      _
    $region27: #{regress_forward.1} parent=1 // pred_check_branch
      %40 = sbr.rel (0) target = $region29
    $region28: #{regress_forward.1} parent=1 // pred_region
      _
    $region29: #{regress_forward.1} parent=1 // pred_fallthru
      _
    // Predicated region
    $region30: #{regress_forward.1} parent=1 // pred_check
      _
    $region31: #{regress_forward.1} parent=1 // pred_check_branch
      %42 = sbr.rel (0) target = $region33
    $region32: #{regress_forward.1} parent=1 // pred_region
      %43 = dma.done [#allocation3], 3840
    $region33: #{regress_forward.1} parent=1 // pred_fallthru
      _
    %v44 = vld [vmem:[%s0] sm:$0xff]
    %v45 = vld [vmem:[%s0 + $0x8] sm:$0xff]
    %v46 = vld [vmem:[%s1] sm:$0xff]
    %v47 = vld [vmem:[%s1 + $0x8] sm:$0xff]
    %v48 = vld [vmem:[%s1 + $0x10] sm:$0xff]
    %v49 = vld [vmem:[%s1 + $0x18] sm:$0xff]
    %v50 = vld [vmem:[%s1 + $0x20] sm:$0xff]
    %v51 = vld [vmem:[%s1 + $0x28] sm:$0xff]
    %v52 = vld [vmem:[%s1 + $0x30] sm:$0x3]
    %v53 = vld [vmem:[%s2] sm:$0x1]
    %v55 = vlaneseq
    %v56 = vshrl.u32 %v55, 7
    %v57 = vsub.s32 0, %v56
    %v58 = vrot.slane %v53, %v57
    %vm60 = vcmask 408576
    %v62 = vsel %vm60, %v44, 0
    %v65 = vsel %vm60, %v45, 0
    %vm67 = vcmask 1041408
    %v69 = vsel %vm67, %v52, 0
    %71 = vmatprep.subr.mxu0 0.0
    %72 = vmatpush1.msra.mxu0 %v46
    %73 = vmatprep.subr.mxu0 0.0
    %74 = vmatpush1.msra.mxu0 %v47
    %75 = vmatprep.subr.mxu0 0.0
    %76 = vmatpush1.msra.mxu0 %v48
    %77 = vmatprep.subr.mxu0 0.0
    %78 = vmatpush1.msra.mxu0 %v49
    %79 = vmatprep.subr.mxu0 0.0
    %80 = vmatpush1.msra.mxu0 %v50
    %81 = vmatprep.subr.mxu0 0.0
    %82 = vmatpush1.msra.mxu0 %v51
    %83 = vmatprep.subr.mxu0 0.0
    %84 = vmatpush1.msra.mxu0 %v69
    %85 = vmatprep.subr.mxu0 0.0
    %86 = vmatpush1.msra.mxu0 0.0
    %87 = vmatprep.subr.mxu0 0.0
    %88 = vmatpush1.msra.mxu0 0.0
    %89 = vmatprep.subr.mxu0 0.0
    %90 = vmatpush1.msra.mxu0 0.0
    %91 = vmatprep.subr.mxu0 0.0
    %92 = vmatpush1.msra.mxu0 0.0
    %93 = vmatprep.subr.mxu0 0.0
    %94 = vmatpush1.msra.mxu0 0.0
    %95 = vmatprep.subr.mxu0 0.0
    %96 = vmatpush1.msra.mxu0 0.0
    %97 = vmatprep.subr.mxu0 0.0
    %98 = vmatpush1.msra.mxu0 0.0
    %99 = vmatprep.subr.mxu0 0.0
    %100 = vmatpush1.msra.mxu0 0.0
    %101 = vmatprep.subr.mxu0 0.0
    %102 = vmatpush1.msra.mxu0 0.0
    %103 = vmatprep.subr.mxu0 0.0
    %104 = vmatpush1.msra.mxu0 0.0
    %105 = vmatprep.subr.mxu0 0.0
    %106 = vmatpush1.msra.mxu0 0.0
    %107 = vmatprep.subr.mxu0 0.0
    %108 = vmatpush1.msra.mxu0 0.0
    %109 = vmatprep.subr.mxu0 0.0
    %110 = vmatpush1.msra.mxu0 0.0
    %111 = vmatprep.subr.mxu0 0.0
    %112 = vmatpush1.msra.mxu0 0.0
    %113 = vmatprep.subr.mxu0 0.0
    %114 = vmatpush1.msra.mxu0 0.0
    %115 = vmatprep.subr.mxu0 0.0
    %116 = vmatpush1.msra.mxu0 0.0
    %117 = vmatprep.subr.mxu0 0.0
    %118 = vmatpush1.msra.mxu0 0.0
    %119 = vmatprep.subr.mxu0 0.0
    %120 = vmatpush1.msra.mxu0 0.0
    %121 = vmatprep.subr.mxu0 0.0
    %122 = vmatpush1.msra.mxu0 0.0
    %123 = vmatprep.subr.mxu0 0.0
    %124 = vmatpush1.msra.mxu0 0.0
    %125 = vmatprep.subr.mxu0 0.0
    %126 = vmatpush1.msra.mxu0 0.0
    %127 = vmatprep.subr.mxu0 0.0
    %128 = vmatpush1.msra.mxu0 0.0
    %129 = vmatprep.subr.mxu0 0.0
    %130 = vmatpush1.msra.mxu0 0.0
    %131 = vmatprep.subr.mxu0 0.0
    %132 = vmatpush1.msra.mxu0 0.0
    %133 = vmatprep.subr.mxu0 0.0
    %134 = vmatpush1.msra.mxu0 0.0
    %135 = vmatprep.mubr.f32.mxu0 0.0
    %136 = vmatmul.mubr.f32.gmra.mrb[0].mxu0 %v62
    %v137 = vpop.f32.mrb[0].mxu0
    %v138 = vadd.f32 %v58, %v137
    %v139 = vpop.f32.mrb[0].mxu0
    %140 = vmatprep.mubr.f32.mxu0 0.0
    %141 = vmatmul.mubr.f32.gmra.mrb[0].mxu0 %v65
    %v142 = vpop.f32.mrb[0].mxu0
    %v143 = vadd.f32 %v58, %v142
    %v144 = vpop.f32.mrb[0].mxu0
    %145 = vdwg.mxu0
    %vm146 = vcmp.gt.f32.partialorder %v138, 0.0
    %vm147 = vcmp.gt.f32.partialorder %v143, 0.0
    %v148 = vmul.f32 %v138, 0.01
    %v149 = vmul.f32 %v143, 0.01
    %v150 = vsel %vm146, %v138, %v148
    %v151 = vsel %vm147, %v143, %v149
    %v152 = vld [vmem:[#allocation2] sm:$0xff]
    %v153 = vld [vmem:[#allocation2 + $0x8] sm:$0xff]
    %v154 = vld [vmem:[#allocation2 + $0x10] sm:$0xff]
    %v155 = vld [vmem:[#allocation2 + $0x18] sm:$0xff]
    %v156 = vld [vmem:[#allocation2 + $0x20] sm:$0xff]
    %v157 = vld [vmem:[#allocation2 + $0x28] sm:$0xff]
    %v158 = vld [vmem:[#allocation2 + $0x30] sm:$0xff]
    %v159 = vld [vmem:[#allocation2 + $0x38] sm:$0xff]
    %v160 = vld [vmem:[#allocation2 + $0x40] sm:$0xff]
    %v161 = vld [vmem:[#allocation2 + $0x48] sm:$0xff]
    %v162 = vld [vmem:[%s4] sm:$0x1]
    %v164 = vlaneseq
    %v165 = vshrl.u32 %v164, 7
    %v166 = vsub.s32 0, %v165
    %v167 = vrot.slane %v162, %v166
    %vm169 = vcmask 654336
    %v171 = vsel %vm169, %v150, 0
    %v174 = vsel %vm169, %v151, 0
    %176 = vmatprep.subr.mxu0 0.0
    %177 = vmatpush1.msra.mxu0 %v152
    %178 = vmatprep.subr.mxu0 0.0
    %179 = vmatpush1.msra.mxu0 %v153
    %180 = vmatprep.subr.mxu0 0.0
    %181 = vmatpush1.msra.mxu0 %v154
    %182 = vmatprep.subr.mxu0 0.0
    %183 = vmatpush1.msra.mxu0 %v155
    %184 = vmatprep.subr.mxu0 0.0
    %185 = vmatpush1.msra.mxu0 %v156
    %186 = vmatprep.subr.mxu0 0.0
    %187 = vmatpush1.msra.mxu0 %v157
    %188 = vmatprep.subr.mxu0 0.0
    %189 = vmatpush1.msra.mxu0 %v158
    %190 = vmatprep.subr.mxu0 0.0
    %191 = vmatpush1.msra.mxu0 %v159
    %192 = vmatprep.subr.mxu0 0.0
    %193 = vmatpush1.msra.mxu0 %v160
    %194 = vmatprep.subr.mxu0 0.0
    %195 = vmatpush1.msra.mxu0 %v161
    %196 = vmatprep.subr.mxu0 0.0
    %197 = vmatpush1.msra.mxu0 0.0
    %198 = vmatprep.subr.mxu0 0.0
    %199 = vmatpush1.msra.mxu0 0.0
    %200 = vmatprep.subr.mxu0 0.0
    %201 = vmatpush1.msra.mxu0 0.0
    %202 = vmatprep.subr.mxu0 0.0
    %203 = vmatpush1.msra.mxu0 0.0
    %204 = vmatprep.subr.mxu0 0.0
    %205 = vmatpush1.msra.mxu0 0.0
    %206 = vmatprep.subr.mxu0 0.0
    %207 = vmatpush1.msra.mxu0 0.0
    %208 = vmatprep.subr.mxu0 0.0
    %209 = vmatpush1.msra.mxu0 0.0
    %210 = vmatprep.subr.mxu0 0.0
    %211 = vmatpush1.msra.mxu0 0.0
    %212 = vmatprep.subr.mxu0 0.0
    %213 = vmatpush1.msra.mxu0 0.0
    %214 = vmatprep.subr.mxu0 0.0
    %215 = vmatpush1.msra.mxu0 0.0
    %216 = vmatprep.subr.mxu0 0.0
    %217 = vmatpush1.msra.mxu0 0.0
    %218 = vmatprep.subr.mxu0 0.0
    %219 = vmatpush1.msra.mxu0 0.0
    %220 = vmatprep.subr.mxu0 0.0
    %221 = vmatpush1.msra.mxu0 0.0
    %222 = vmatprep.subr.mxu0 0.0
    %223 = vmatpush1.msra.mxu0 0.0
    %224 = vmatprep.subr.mxu0 0.0
    %225 = vmatpush1.msra.mxu0 0.0
    %226 = vmatprep.subr.mxu0 0.0
    %227 = vmatpush1.msra.mxu0 0.0
    %228 = vmatprep.subr.mxu0 0.0
    %229 = vmatpush1.msra.mxu0 0.0
    %230 = vmatprep.subr.mxu0 0.0
    %231 = vmatpush1.msra.mxu0 0.0
    %232 = vmatprep.subr.mxu0 0.0
    %233 = vmatpush1.msra.mxu0 0.0
    %234 = vmatprep.subr.mxu0 0.0
    %235 = vmatpush1.msra.mxu0 0.0
    %236 = vmatprep.subr.mxu0 0.0
    %237 = vmatpush1.msra.mxu0 0.0
    %238 = vmatprep.subr.mxu0 0.0
    %239 = vmatpush1.msra.mxu0 0.0
    %240 = vmatprep.mubr.f32.mxu0 0.0
    %241 = vmatmul.mubr.f32.gmra.mrb[0].mxu0 %v171
    %v242 = vpop.f32.mrb[0].mxu0
    %v243 = vadd.f32 %v167, %v242
    %v244 = vpop.f32.mrb[0].mxu0
    %245 = vmatprep.mubr.f32.mxu0 0.0
    %246 = vmatmul.mubr.f32.gmra.mrb[0].mxu0 %v174
    %v247 = vpop.f32.mrb[0].mxu0
    %v248 = vadd.f32 %v167, %v247
    %v249 = vpop.f32.mrb[0].mxu0
    %250 = vdwg.mxu0
    %vm251 = vcmp.gt.f32.partialorder %v243, 0.0
    %vm252 = vcmp.gt.f32.partialorder %v248, 0.0
    %v253 = vmul.f32 %v243, 0.01
    %v254 = vmul.f32 %v248, 0.01
    %v255 = vsel %vm251, %v243, %v253
    %v256 = vsel %vm252, %v248, %v254
    %s257 = scalar_lea.vmem [#allocation2], 80
    %v258 = vld [vmem:[%s257] sm:$0xff]
    %v259 = vld [vmem:[%s257 + $0x8] sm:$0xff]
    %v260 = vld [vmem:[%s257 + $0x10] sm:$0xff]
    %v261 = vld [vmem:[%s257 + $0x18] sm:$0xff]
    %v262 = vld [vmem:[%s257 + $0x20] sm:$0xff]
    %v263 = vld [vmem:[%s257 + $0x28] sm:$0xff]
    %v264 = vld [vmem:[%s257 + $0x30] sm:$0xff]
    %v265 = vld [vmem:[%s257 + $0x38] sm:$0xff]
    %v266 = vld [vmem:[%s257 + $0x40] sm:$0xff]
    %v267 = vld [vmem:[%s257 + $0x48] sm:$0xff]
    %s268 = scalar_lea.vmem %s4, 1
    %v269 = vld [vmem:[%s268] sm:$0x1]
    %v271 = vlaneseq
    %v272 = vshrl.u32 %v271, 7
    %v273 = vsub.s32 0, %v272
    %v274 = vrot.slane %v269, %v273
    %v277 = vsel %vm169, %v255, 0
    %v280 = vsel %vm169, %v256, 0
    %282 = vmatprep.subr.mxu0 0.0
    %283 = vmatpush1.msra.mxu0 %v258
    %284 = vmatprep.subr.mxu0 0.0
    %285 = vmatpush1.msra.mxu0 %v259
    %286 = vmatprep.subr.mxu0 0.0
    %287 = vmatpush1.msra.mxu0 %v260
    %288 = vmatprep.subr.mxu0 0.0
    %289 = vmatpush1.msra.mxu0 %v261
    %290 = vmatprep.subr.mxu0 0.0
    %291 = vmatpush1.msra.mxu0 %v262
    %292 = vmatprep.subr.mxu0 0.0
    %293 = vmatpush1.msra.mxu0 %v263
    %294 = vmatprep.subr.mxu0 0.0
    %295 = vmatpush1.msra.mxu0 %v264
    %296 = vmatprep.subr.mxu0 0.0
    %297 = vmatpush1.msra.mxu0 %v265
    %298 = vmatprep.subr.mxu0 0.0
    %299 = vmatpush1.msra.mxu0 %v266
    %300 = vmatprep.subr.mxu0 0.0
    %301 = vmatpush1.msra.mxu0 %v267
    %302 = vmatprep.subr.mxu0 0.0
    %303 = vmatpush1.msra.mxu0 0.0
    %304 = vmatprep.subr.mxu0 0.0
    %305 = vmatpush1.msra.mxu0 0.0
    %306 = vmatprep.subr.mxu0 0.0
    %307 = vmatpush1.msra.mxu0 0.0
    %308 = vmatprep.subr.mxu0 0.0
    %309 = vmatpush1.msra.mxu0 0.0
    %310 = vmatprep.subr.mxu0 0.0
    %311 = vmatpush1.msra.mxu0 0.0
    %312 = vmatprep.subr.mxu0 0.0
    %313 = vmatpush1.msra.mxu0 0.0
    %314 = vmatprep.subr.mxu0 0.0
    %315 = vmatpush1.msra.mxu0 0.0
    %316 = vmatprep.subr.mxu0 0.0
    %317 = vmatpush1.msra.mxu0 0.0
    %318 = vmatprep.subr.mxu0 0.0
    %319 = vmatpush1.msra.mxu0 0.0
    %320 = vmatprep.subr.mxu0 0.0
    %321 = vmatpush1.msra.mxu0 0.0
    %322 = vmatprep.subr.mxu0 0.0
    %323 = vmatpush1.msra.mxu0 0.0
    %324 = vmatprep.subr.mxu0 0.0
    %325 = vmatpush1.msra.mxu0 0.0
    %326 = vmatprep.subr.mxu0 0.0
    %327 = vmatpush1.msra.mxu0 0.0
    %328 = vmatprep.subr.mxu0 0.0
    %329 = vmatpush1.msra.mxu0 0.0
    %330 = vmatprep.subr.mxu0 0.0
    %331 = vmatpush1.msra.mxu0 0.0
    %332 = vmatprep.subr.mxu0 0.0
    %333 = vmatpush1.msra.mxu0 0.0
    %334 = vmatprep.subr.mxu0 0.0
    %335 = vmatpush1.msra.mxu0 0.0
    %336 = vmatprep.subr.mxu0 0.0
    %337 = vmatpush1.msra.mxu0 0.0
    %338 = vmatprep.subr.mxu0 0.0
    %339 = vmatpush1.msra.mxu0 0.0
    %340 = vmatprep.subr.mxu0 0.0
    %341 = vmatpush1.msra.mxu0 0.0
    %342 = vmatprep.subr.mxu0 0.0
    %343 = vmatpush1.msra.mxu0 0.0
    %344 = vmatprep.subr.mxu0 0.0
    %345 = vmatpush1.msra.mxu0 0.0
    %346 = vmatprep.mubr.f32.mxu0 0.0
    %347 = vmatmul.mubr.f32.gmra.mrb[0].mxu0 %v277
    %v348 = vpop.f32.mrb[0].mxu0
    %v349 = vadd.f32 %v274, %v348
    %v350 = vpop.f32.mrb[0].mxu0
    %351 = vmatprep.mubr.f32.mxu0 0.0
    %352 = vmatmul.mubr.f32.gmra.mrb[0].mxu0 %v280
    %v353 = vpop.f32.mrb[0].mxu0
    %v354 = vadd.f32 %v274, %v353
    %v355 = vpop.f32.mrb[0].mxu0
    %356 = vdwg.mxu0
    %vm357 = vcmp.gt.f32.partialorder %v349, 0.0
    %vm358 = vcmp.gt.f32.partialorder %v354, 0.0
    %v359 = vmul.f32 %v349, 0.01
    %v360 = vmul.f32 %v354, 0.01
    %v361 = vsel %vm357, %v349, %v359
    %v362 = vsel %vm358, %v354, %v360
    %s363 = scalar_lea.vmem [#allocation2], 160
    %v364 = vld [vmem:[%s363] sm:$0xff]
    %v365 = vld [vmem:[%s363 + $0x8] sm:$0xff]
    %v366 = vld [vmem:[%s363 + $0x10] sm:$0xff]
    %v367 = vld [vmem:[%s363 + $0x18] sm:$0xff]
    %v368 = vld [vmem:[%s363 + $0x20] sm:$0xff]
    %v369 = vld [vmem:[%s363 + $0x28] sm:$0xff]
    %v370 = vld [vmem:[%s363 + $0x30] sm:$0xff]
    %v371 = vld [vmem:[%s363 + $0x38] sm:$0xff]
    %v372 = vld [vmem:[%s363 + $0x40] sm:$0xff]
    %v373 = vld [vmem:[%s363 + $0x48] sm:$0xff]
    %s374 = scalar_lea.vmem %s4, 2
    %v375 = vld [vmem:[%s374] sm:$0x1]
    %v377 = vlaneseq
    %v378 = vshrl.u32 %v377, 7
    %v379 = vsub.s32 0, %v378
    %v380 = vrot.slane %v375, %v379
    %v383 = vsel %vm169, %v361, 0
    %v386 = vsel %vm169, %v362, 0
    %388 = vmatprep.subr.mxu0 0.0
    %389 = vmatpush1.msra.mxu0 %v364
    %390 = vmatprep.subr.mxu0 0.0
    %391 = vmatpush1.msra.mxu0 %v365
    %392 = vmatprep.subr.mxu0 0.0
    %393 = vmatpush1.msra.mxu0 %v366
    %394 = vmatprep.subr.mxu0 0.0
    %395 = vmatpush1.msra.mxu0 %v367
    %396 = vmatprep.subr.mxu0 0.0
    %397 = vmatpush1.msra.mxu0 %v368
    %398 = vmatprep.subr.mxu0 0.0
    %399 = vmatpush1.msra.mxu0 %v369
    %400 = vmatprep.subr.mxu0 0.0
    %401 = vmatpush1.msra.mxu0 %v370
    %402 = vmatprep.subr.mxu0 0.0
    %403 = vmatpush1.msra.mxu0 %v371
    %404 = vmatprep.subr.mxu0 0.0
    %405 = vmatpush1.msra.mxu0 %v372
    %406 = vmatprep.subr.mxu0 0.0
    %407 = vmatpush1.msra.mxu0 %v373
    %408 = vmatprep.subr.mxu0 0.0
    %409 = vmatpush1.msra.mxu0 0.0
    %410 = vmatprep.subr.mxu0 0.0
    %411 = vmatpush1.msra.mxu0 0.0
    %412 = vmatprep.subr.mxu0 0.0
    %413 = vmatpush1.msra.mxu0 0.0
    %414 = vmatprep.subr.mxu0 0.0
    %415 = vmatpush1.msra.mxu0 0.0
    %416 = vmatprep.subr.mxu0 0.0
    %417 = vmatpush1.msra.mxu0 0.0
    %418 = vmatprep.subr.mxu0 0.0
    %419 = vmatpush1.msra.mxu0 0.0
    %420 = vmatprep.subr.mxu0 0.0
    %421 = vmatpush1.msra.mxu0 0.0
    %422 = vmatprep.subr.mxu0 0.0
    %423 = vmatpush1.msra.mxu0 0.0
    %424 = vmatprep.subr.mxu0 0.0
    %425 = vmatpush1.msra.mxu0 0.0
    %426 = vmatprep.subr.mxu0 0.0
    %427 = vmatpush1.msra.mxu0 0.0
    %428 = vmatprep.subr.mxu0 0.0
    %429 = vmatpush1.msra.mxu0 0.0
    %430 = vmatprep.subr.mxu0 0.0
    %431 = vmatpush1.msra.mxu0 0.0
    %432 = vmatprep.subr.mxu0 0.0
    %433 = vmatpush1.msra.mxu0 0.0
    %434 = vmatprep.subr.mxu0 0.0
    %435 = vmatpush1.msra.mxu0 0.0
    %436 = vmatprep.subr.mxu0 0.0
    %437 = vmatpush1.msra.mxu0 0.0
    %438 = vmatprep.subr.mxu0 0.0
    %439 = vmatpush1.msra.mxu0 0.0
    %440 = vmatprep.subr.mxu0 0.0
    %441 = vmatpush1.msra.mxu0 0.0
    %442 = vmatprep.subr.mxu0 0.0
    %443 = vmatpush1.msra.mxu0 0.0
    %444 = vmatprep.subr.mxu0 0.0
    %445 = vmatpush1.msra.mxu0 0.0
    %446 = vmatprep.subr.mxu0 0.0
    %447 = vmatpush1.msra.mxu0 0.0
    %448 = vmatprep.subr.mxu0 0.0
    %449 = vmatpush1.msra.mxu0 0.0
    %450 = vmatprep.subr.mxu0 0.0
    %451 = vmatpush1.msra.mxu0 0.0
    %452 = vmatprep.mubr.f32.mxu0 0.0
    %453 = vmatmul.mubr.f32.gmra.mrb[0].mxu0 %v383
    %v454 = vpop.f32.mrb[0].mxu0
    %v455 = vadd.f32 %v380, %v454
    %v456 = vpop.f32.mrb[0].mxu0
    %457 = vmatprep.mubr.f32.mxu0 0.0
    %458 = vmatmul.mubr.f32.gmra.mrb[0].mxu0 %v386
    %v459 = vpop.f32.mrb[0].mxu0
    %v460 = vadd.f32 %v380, %v459
    %v461 = vpop.f32.mrb[0].mxu0
    %462 = vdwg.mxu0
    %vm463 = vcmp.gt.f32.partialorder %v455, 0.0
    %vm464 = vcmp.gt.f32.partialorder %v460, 0.0
    %v465 = vmul.f32 %v455, 0.01
    %v466 = vmul.f32 %v460, 0.01
    %v467 = vsel %vm463, %v455, %v465
    %v468 = vsel %vm464, %v460, %v466
    %v469 = vld [vmem:[%s5] sm:$0xff]
    %v470 = vld [vmem:[%s5 + $0x8] sm:$0xff]
    %v471 = vld [vmem:[%s5 + $0x10] sm:$0xff]
    %v472 = vld [vmem:[%s5 + $0x18] sm:$0xff]
    %v473 = vld [vmem:[%s5 + $0x20] sm:$0xff]
    %v474 = vld [vmem:[%s5 + $0x28] sm:$0xff]
    %v475 = vld [vmem:[%s5 + $0x30] sm:$0xff]
    %v476 = vld [vmem:[%s5 + $0x38] sm:$0xff]
    %v477 = vld [vmem:[%s5 + $0x40] sm:$0xff]
    %v478 = vld [vmem:[%s5 + $0x48] sm:$0xff]
    %v479 = vld [vmem:[%s6] sm:$0x1]
    %v481 = vlaneseq
    %v482 = vshrl.u32 %v481, 7
    %v483 = vsub.s32 0, %v482
    %v484 = vrot.slane %v479, %v483
    %v487 = vsel %vm169, %v467, 0
    %v490 = vsel %vm169, %v468, 0
    %492 = vmatprep.subr.mxu0 0.0
    %493 = vmatpush1.msra.mxu0 %v469
    %494 = vmatprep.subr.mxu0 0.0
    %495 = vmatpush1.msra.mxu0 %v470
    %496 = vmatprep.subr.mxu0 0.0
    %497 = vmatpush1.msra.mxu0 %v471
    %498 = vmatprep.subr.mxu0 0.0
    %499 = vmatpush1.msra.mxu0 %v472
    %500 = vmatprep.subr.mxu0 0.0
    %501 = vmatpush1.msra.mxu0 %v473
    %502 = vmatprep.subr.mxu0 0.0
    %503 = vmatpush1.msra.mxu0 %v474
    %504 = vmatprep.subr.mxu0 0.0
    %505 = vmatpush1.msra.mxu0 %v475
    %506 = vmatprep.subr.mxu0 0.0
    %507 = vmatpush1.msra.mxu0 %v476
    %508 = vmatprep.subr.mxu0 0.0
    %509 = vmatpush1.msra.mxu0 %v477
    %510 = vmatprep.subr.mxu0 0.0
    %511 = vmatpush1.msra.mxu0 %v478
    %512 = vmatprep.subr.mxu0 0.0
    %513 = vmatpush1.msra.mxu0 0.0
    %514 = vmatprep.subr.mxu0 0.0
    %515 = vmatpush1.msra.mxu0 0.0
    %516 = vmatprep.subr.mxu0 0.0
    %517 = vmatpush1.msra.mxu0 0.0
    %518 = vmatprep.subr.mxu0 0.0
    %519 = vmatpush1.msra.mxu0 0.0
    %520 = vmatprep.subr.mxu0 0.0
    %521 = vmatpush1.msra.mxu0 0.0
    %522 = vmatprep.subr.mxu0 0.0
    %523 = vmatpush1.msra.mxu0 0.0
    %524 = vmatprep.subr.mxu0 0.0
    %525 = vmatpush1.msra.mxu0 0.0
    %526 = vmatprep.subr.mxu0 0.0
    %527 = vmatpush1.msra.mxu0 0.0
    %528 = vmatprep.subr.mxu0 0.0
    %529 = vmatpush1.msra.mxu0 0.0
    %530 = vmatprep.subr.mxu0 0.0
    %531 = vmatpush1.msra.mxu0 0.0
    %532 = vmatprep.subr.mxu0 0.0
    %533 = vmatpush1.msra.mxu0 0.0
    %534 = vmatprep.subr.mxu0 0.0
    %535 = vmatpush1.msra.mxu0 0.0
    %536 = vmatprep.subr.mxu0 0.0
    %537 = vmatpush1.msra.mxu0 0.0
    %538 = vmatprep.subr.mxu0 0.0
    %539 = vmatpush1.msra.mxu0 0.0
    %540 = vmatprep.subr.mxu0 0.0
    %541 = vmatpush1.msra.mxu0 0.0
    %542 = vmatprep.subr.mxu0 0.0
    %543 = vmatpush1.msra.mxu0 0.0
    %544 = vmatprep.subr.mxu0 0.0
    %545 = vmatpush1.msra.mxu0 0.0
    %546 = vmatprep.subr.mxu0 0.0
    %547 = vmatpush1.msra.mxu0 0.0
    %548 = vmatprep.subr.mxu0 0.0
    %549 = vmatpush1.msra.mxu0 0.0
    %550 = vmatprep.subr.mxu0 0.0
    %551 = vmatpush1.msra.mxu0 0.0
    %552 = vmatprep.subr.mxu0 0.0
    %553 = vmatpush1.msra.mxu0 0.0
    %554 = vmatprep.subr.mxu0 0.0
    %555 = vmatpush1.msra.mxu0 0.0
    %556 = vmatprep.mubr.f32.mxu0 0.0
    %557 = vmatmul.mubr.f32.gmra.mrb[0].mxu0 %v487
    %v558 = vpop.f32.mrb[0].mxu0
    %v559 = vadd.f32 %v484, %v558
    %v560 = vpop.f32.mrb[0].mxu0
    %561 = vmatprep.mubr.f32.mxu0 0.0
    %562 = vmatmul.mubr.f32.gmra.mrb[0].mxu0 %v490
    %v563 = vpop.f32.mrb[0].mxu0
    %v564 = vadd.f32 %v484, %v563
    %v565 = vpop.f32.mrb[0].mxu0
    %566 = vdwg.mxu0
    %567 = vst.msk [vmem:[#allocation5] sm:$0xff] %vm169, %v467
    %568 = vst.msk [vmem:[#allocation5 + $0x8] sm:$0xff] %vm169, %v468
    %569 = vst.msk [vmem:[#allocation6] sm:$0xff] %vm60, %v559
    %570 = vst.msk [vmem:[#allocation6 + $0x8] sm:$0xff] %vm60, %v564
    // Predicated region
    $region34: #{regress_forward.1} parent=1 // pred_check
      _
    $region35: #{regress_forward.1} parent=1 // pred_check_branch
      %572 = sbr.rel (0) target = $region37
    $region36: #{regress_forward.1} parent=1 // pred_region
      %s574 = ssub.s32 256, 256
      %575 = vsyncadd [#allocation4], %s574
      %s576 = sshll.u32 [#allocation5], 4
      %s577 = int_to_ptr.vmem [resolvable:$true] %s576
      %582 = dma.vmem_to_hbm [thread:$0]  %s577, 256, %s7, [#allocation4], 128, 128, 8
    $region37: #{regress_forward.1} parent=1 // pred_fallthru
      _
    // Predicated region
    $region38: #{regress_forward.1} parent=1 // pred_check
      _
    $region39: #{regress_forward.1} parent=1 // pred_check_branch
      %584 = sbr.rel (0) target = $region41
    $region40: #{regress_forward.1} parent=1 // pred_region
      %s586 = ssub.s32 256, 256
      %587 = vsyncadd [#allocation7], %s586
      %s588 = sshll.u32 [#allocation6], 4
      %s589 = int_to_ptr.vmem [resolvable:$true] %s588
      %594 = dma.vmem_to_hbm [thread:$0]  %s589, 256, %s8, [#allocation7], 128, 128, 8
    $region41: #{regress_forward.1} parent=1 // pred_fallthru
      _
    // Predicated region
    $region42: #{regress_forward.1} parent=1 // pred_check
      _
    $region43: #{regress_forward.1} parent=1 // pred_check_branch
      %596 = sbr.rel (0) target = $region45
    $region44: #{regress_forward.1} parent=1 // pred_region
      %597 = dma.done [#allocation4], 256
    $region45: #{regress_forward.1} parent=1 // pred_fallthru
      _
    // Predicated region
    $region46: #{regress_forward.1} parent=1 // pred_check
      _
    $region47: #{regress_forward.1} parent=1 // pred_check_branch
      %599 = sbr.rel (0) target = $region49
    $region48: #{regress_forward.1} parent=1 // pred_region
      %600 = dma.done [#allocation7], 256
    $region49: #{regress_forward.1} parent=1 // pred_fallthru
      _
    %601 = vsyncpa [#allocation3], 1
    %602 = vsyncpa [#allocation4], 1
    %603 = vsyncpa [#allocation7], 1

</llo_original>
